<compile_context>
chip_gen: v7x
topology: tpu7x:2x2x1
jax: 0.10.0
libtpu: 0.0.40
codegen_flags: <defaults>
</compile_context>

<pallas_src>
import functools

import jax
import jax.numpy as jnp
from jax import lax
from jax.experimental import pallas as pl
from jax.experimental.pallas import tpu as pltpu


# int32 views of the standard 32-bit mixing constants (arithmetic wraps like uint32).
_M1 = -2048144789    # 0x85ebca6b
_M2 = -1028477387    # 0xc2b2ae35
_GOLD = -1640531527  # 0x9e3779b9


def _dropout_kernel(seed_ref, x_ref, o_ref, *, threshold, inv_keep, tm, cols):
    i = pl.program_id(0)
    key = seed_ref[0]

    # Per-element counter: global (row, col) position of this tile's elements.
    r = lax.broadcasted_iota(jnp.int32, (tm, cols), 0) + i * tm
    c = lax.broadcasted_iota(jnp.int32, (tm, cols), 1)
    v = r * jnp.int32(cols) + c

    # Counter-based hash (murmur3 fmix32).  Seed enters via an odd-constant multiply so
    # adjacent base seeds do not produce overlapping streams across tiles/calls.
    v = v ^ (key * jnp.int32(_GOLD))
    v = v ^ lax.shift_right_logical(v, 16)
    v = v * jnp.int32(_M1)
    v = v ^ lax.shift_right_logical(v, 13)
    v = v * jnp.int32(_M2)
    v = v ^ lax.shift_right_logical(v, 16)

    u24 = lax.shift_right_logical(v, 8)          # uniform integer in [0, 2^24)
    keep = u24 >= jnp.int32(threshold)           # keep with probability (1 - p)

    x = x_ref[...]
    # Survivors scaled by 1/(1-p), dropped -> 0; math stays in x's native dtype.
    o_ref[...] = jnp.where(keep, x * inv_keep, jnp.zeros_like(x)).astype(o_ref.dtype)


def _pick_layout(n):
    """Pick lane-dense column width. Returns (cols, needs_pad)."""
    for cols in (1024, 512, 256, 128):
        if n % (cols * 8) == 0:
            return cols, False
    return 128, True


def _pick_tm(rows8):
    """Row tile: multiple of 8, divides rows8, <=512, and >=4 grid steps when possible."""
    cap = min(512, rows8)
    if rows8 >= 32:
        cap = min(cap, max(8, (rows8 // 4) // 8 * 8))
    tm = cap
    while rows8 % tm:
        tm -= 8
    return tm


@functools.partial(jax.jit, static_argnames=("p",))
def _dropout_impl(x, seed, *, p):
    orig_shape = x.shape
    n = x.size
    cols, needs_pad = _pick_layout(n)

    if not needs_pad:
        rows = n // cols                              # multiple of 8 by construction
        x2 = x.reshape(rows, cols)                    # contiguous view reshape, no pad
    else:
        rows = -(-n // cols)
        rows = ((rows + 7) // 8) * 8                  # sublane-aligned
        pad = rows * cols - n
        x2 = jnp.pad(x.reshape(-1), (0, pad)).reshape(rows, cols)

    tm = _pick_tm(rows)
    seed_arr = jnp.reshape(seed, (1,)).astype(jnp.int32)

    kernel = functools.partial(
        _dropout_kernel,
        threshold=int(round(p * (1 << 24))),
        inv_keep=float(1.0 / (1.0 - p)),
        tm=tm,
        cols=cols,
    )

    out2 = pl.pallas_call(
        kernel,
        out_shape=jax.ShapeDtypeStruct((rows, cols), x.dtype),
        grid_spec=pltpu.PrefetchScalarGridSpec(
            num_scalar_prefetch=1,
            grid=(rows // tm,),
            in_specs=[pl.BlockSpec((tm, cols), lambda i, s: (i, 0))],
            out_specs=pl.BlockSpec((tm, cols), lambda i, s: (i, 0)),
        ),
        compiler_params=pltpu.CompilerParams(
            dimension_semantics=("parallel",),
        ),
    )(seed_arr, x2)

    if needs_pad:
        return out2.reshape(-1)[:n].reshape(orig_shape)
    return out2.reshape(orig_shape)


def dropout(x, p=0.1, *, seed=0, training=True):
    """Pallas TPU implementation of F.dropout(x, p, training)."""
    if (not training) or p <= 0.0:
        return x
    if p >= 1.0:
        return jnp.zeros_like(x)
    return _dropout_impl(x, jnp.int32(seed), p=float(p))


class Dpout:
    """Mirror of the PyTorch module: Dpout(dpc).forward(x)."""

    def __init__(self, dpc=0.1):
        self.dpc = dpc
        self.training = True

    def __call__(self, x, *, seed=0):
        return dropout(x, self.dpc, seed=seed, training=self.training)


if __name__ == "__main__":
    key = jax.random.PRNGKey(0)
    x = jax.random.normal(key, (2, 4, 16, 16), dtype=jnp.float32)
    p = 0.1

    out = dropout(x, p, seed=1234, training=True)
    out = jax.block_until_ready(out)

    # --- correctness checks (dropout is stochastic; verify its defining properties) ---
    assert out.shape == x.shape and out.dtype == x.dtype

    keep_scale = 1.0 / (1.0 - p)
    dropped = (out == 0.0)
    kept = ~dropped

    # Every kept element must equal x / (1 - p).
    diff = jnp.where(kept, jnp.abs(out - x * keep_scale), 0.0)
    assert float(jnp.max(diff)) < 1e-4, float(jnp.max(diff))

    # Drop fraction should be near p (loose statistical bound for n = 2048).
    frac = float(jnp.mean(dropped.astype(jnp.float32)))
    assert 0.0 < frac < 0.3, frac

    # Eval mode (training=False) is the identity, matching F.dropout semantics.
    out_eval = jax.block_until_ready(dropout(x, p, seed=1234, training=False))
    assert jnp.array_equal(out_eval, x)

    # Native-dtype path smoke test (bf16 in -> bf16 out, no f32 round-trip).
    xb = x.astype(jnp.bfloat16)
    outb = jax.block_until_ready(dropout(xb, p, seed=7, training=True))
    assert outb.shape == xb.shape and outb.dtype == jnp.bfloat16

    print("KERNEL_OK")
</pallas_src>

<mosaic_0001>
module attributes {stable_mosaic.version = 11 : i64} {
  func.func @_dropout_kernel(%arg0: i32, %arg1: memref<1xi32, #tpu.memory_space<smem>>, %arg2: memref<8x256xf32, #tpu.memory_space<vmem>>, %arg3: memref<8x256xf32, #tpu.memory_space<vmem>>) attributes {dimension_semantics = [#tpu.dimension_semantics<parallel>], iteration_bounds = array<i64: 1>, scalar_prefetch = 1 : i64, scratch_operands = 0 : i64, tpu.core_type = #tpu.core_type<tc>, window_params = [{transform_indices = @transform_0, window_bounds = array<i64: 8, 256>}, {transform_indices = @transform_1, window_bounds = array<i64: 8, 256>}]} {
    %c0 = arith.constant 0 : index
    %0 = memref.load %arg1[%c0] : memref<1xi32, #tpu.memory_space<smem>>
    %1 = tpu.iota {dimensions = array<i32: 0>} : vector<8x256xi32>
    %c8_i32 = arith.constant 8 : i32
    %2 = arith.muli %arg0, %c8_i32 : i32
    %3 = vector.broadcast %2 : i32 to vector<8x256xi32>
    %4 = arith.addi %1, %3 : vector<8x256xi32>
    %5 = tpu.iota {dimensions = array<i32: 1>} : vector<8x256xi32>
    %c256_i32 = arith.constant 256 : i32
    %6 = vector.broadcast %c256_i32 : i32 to vector<8x256xi32>
    %7 = arith.muli %4, %6 : vector<8x256xi32>
    %8 = arith.addi %7, %5 : vector<8x256xi32>
    %c-1640531527_i32 = arith.constant -1640531527 : i32
    %9 = arith.muli %0, %c-1640531527_i32 : i32
    %10 = vector.broadcast %9 : i32 to vector<8x256xi32>
    %11 = arith.xori %8, %10 : vector<8x256xi32>
    %c16_i32 = arith.constant 16 : i32
    %12 = vector.broadcast %c16_i32 : i32 to vector<8x256xi32>
    %13 = arith.shrui %11, %12 : vector<8x256xi32>
    %14 = arith.xori %11, %13 : vector<8x256xi32>
    %c-2048144789_i32 = arith.constant -2048144789 : i32
    %15 = vector.broadcast %c-2048144789_i32 : i32 to vector<8x256xi32>
    %16 = arith.muli %14, %15 : vector<8x256xi32>
    %c13_i32 = arith.constant 13 : i32
    %17 = vector.broadcast %c13_i32 : i32 to vector<8x256xi32>
    %18 = arith.shrui %16, %17 : vector<8x256xi32>
    %19 = arith.xori %16, %18 : vector<8x256xi32>
    %c-1028477387_i32 = arith.constant -1028477387 : i32
    %20 = vector.broadcast %c-1028477387_i32 : i32 to vector<8x256xi32>
    %21 = arith.muli %19, %20 : vector<8x256xi32>
    %c16_i32_0 = arith.constant 16 : i32
    %22 = vector.broadcast %c16_i32_0 : i32 to vector<8x256xi32>
    %23 = arith.shrui %21, %22 : vector<8x256xi32>
    %24 = arith.xori %21, %23 : vector<8x256xi32>
    %c8_i32_1 = arith.constant 8 : i32
    %25 = vector.broadcast %c8_i32_1 : i32 to vector<8x256xi32>
    %26 = arith.shrui %24, %25 : vector<8x256xi32>
    %c1677722_i32 = arith.constant 1677722 : i32
    %27 = vector.broadcast %c1677722_i32 : i32 to vector<8x256xi32>
    %28 = arith.cmpi sge, %26, %27 : vector<8x256xi32>
    %c0_2 = arith.constant 0 : index
    %c0_3 = arith.constant 0 : index
    %29 = vector.load %arg2[%c0_2, %c0_3] : memref<8x256xf32, #tpu.memory_space<vmem>>, vector<8x256xf32>
    %cst = arith.constant 1.11111116 : f32
    %30 = vector.broadcast %cst : f32 to vector<8x256xf32>
    %31 = arith.mulf %29, %30 : vector<8x256xf32>
    %cst_4 = arith.constant 0.000000e+00 : f32
    %32 = vector.broadcast %cst_4 : f32 to vector<8x256xf32>
    %33 = arith.select %28, %31, %32 : vector<8x256xi1>, vector<8x256xf32>
    %c0_5 = arith.constant 0 : index
    %c0_6 = arith.constant 0 : index
    %34 = vector.load %arg3[%c0_5, %c0_6] : memref<8x256xf32, #tpu.memory_space<vmem>>, vector<8x256xf32>
    tpu.vector_store %arg3[%c0_5, %c0_6], %33 {strides = array<i32>} : memref<8x256xf32, #tpu.memory_space<vmem>>, vector<8x256xf32>,
    return
  }
  func.func @transform_0(%arg0: i32, %arg1: memref<1xi32, #tpu.memory_space<smem>>) -> (i32, i32) {
    %c0_i32 = arith.constant 0 : i32
    %c0_i32_0 = arith.constant 0 : i32
    return %arg0, %c0_i32 : i32, i32
  }
  func.func @transform_1(%arg0: i32, %arg1: memref<1xi32, #tpu.memory_space<smem>>) -> (i32, i32) {
    %c0_i32 = arith.constant 0 : i32
    %c0_i32_0 = arith.constant 0 : i32
    return %arg0, %c0_i32 : i32, i32
  }
}

</mosaic_0001>

<llo_original>
// kernel: _dropout_impl.1
$region0: #{_dropout_impl.1}
  #allocation0 [shape = 'u32[]', space=smem, size = 0x4, offset = 0x4, fixed_abs, tag = 'smem constant byte address 0x4 - core index']
  #allocation1 [shape = 'u32[144,128]{1,0:T(1,128)}', space=vmem, size = 0x12000, scoped, tag = 'internal scratch']
  #allocation2 [shape = 's32[1]{0}', space=sflag, size = 0x4, scoped, tag = 'scoped memory for _dropout_impl.1']
  #allocation3 [shape = 's32[1]{0:T(128)S(6)}', space=smem, size = 0x200, scoped, tag = 'prefetched SMEM operand 0']
  %s0 = inlined_call_operand.<no memory space> [shape: s32[1], index: 0, kind: input, shape index: {}]
  %s1 = inlined_call_operand.vmem [shape: f32[8,256], index: 1, kind: input, shape index: {}]
  %s2 = inlined_call_operand.vmem [shape: f32[8,256], index: 2, kind: output, shape index: {}]
  %s3 = sld [smem:[#allocation0]]
  $region14: #{_dropout_impl.1} parent=0
    _
  %s5 = ssub.s32 1, %s3
  %s6 = scalar_select 0, %s5, %s3
  %7 = sst [smem:[#allocation3]] %s0
  // Predicated region
  $region2: #{_dropout_impl.1} parent=0 // pred_check
    _
  $region3: #{_dropout_impl.1} parent=0 // pred_check_branch
    %9 = sbr.rel (0) target = $region5
  $region4: #{_dropout_impl.1} parent=0 // pred_region
    _
  $region5: #{_dropout_impl.1} parent=0 // pred_fallthru
    _
  %s10 = sld [smem:[#allocation3]]
  %v11 = vlaneseq
  %v12 = vshrl.u32 %v11, 7
  %s13 = smul.u32 0, 8
  %v14 = vstv %s13
  %v15 = vadd.s32 %v12, %v14
  %v16 = vlaneseq
  %v17 = vand.u32 %v16, 127
  %v18 = vadd.s32 %v17, 128
  %v19 = vmul.u32 %v15, 256
  %v20 = vadd.s32 %v19, %v17
  %v21 = vadd.s32 %v19, %v18
  %s22 = smul.u32 %s10, 2654435769
  %v23 = vstv %s22
  %v24 = vxor.u32 %v20, %v23
  %v25 = vxor.u32 %v21, %v23
  %v26 = vshrl.u32 %v24, 16
  %v27 = vshrl.u32 %v25, 16
  %v28 = vxor.u32 %v24, %v26
  %v29 = vxor.u32 %v25, %v27
  %v30 = vmul.u32 %v28, 2246822507
  %v31 = vmul.u32 %v29, 2246822507
  %v32 = vshrl.u32 %v30, 13
  %v33 = vshrl.u32 %v31, 13
  %v34 = vxor.u32 %v30, %v32
  %v35 = vxor.u32 %v31, %v33
  %v36 = vmul.u32 %v34, 3266489909
  %v37 = vmul.u32 %v35, 3266489909
  %v38 = vshrl.u32 %v36, 16
  %v39 = vshrl.u32 %v37, 16
  %v40 = vxor.u32 %v36, %v38
  %v41 = vxor.u32 %v37, %v39
  %v42 = vshrl.u32 %v40, 8
  %v43 = vshrl.u32 %v41, 8
  %vm44 = vcmp.ge.s32.totalorder %v42, 1677722
  %vm45 = vcmp.ge.s32.totalorder %v43, 1677722
  %v46 = vld [vmem:[%s1] sm:$0xff]
  %v47 = vld [vmem:[%s1 + $0x8] sm:$0xff]
  %v48 = vmul.f32 %v46, 1.1111112
  %v49 = vmul.f32 %v47, 1.1111112
  %v50 = vsel %vm44, %v48, 0.0
  %v51 = vsel %vm45, %v49, 0.0
  %52 = vst [vmem:[%s2] sm:$0xff] %v50
  %53 = vst [vmem:[%s2 + $0x8] sm:$0xff] %v51
  // Predicated region
  $region6: #{_dropout_impl.1} parent=0 // pred_check
    _
  $region7: #{_dropout_impl.1} parent=0 // pred_check_branch
    %55 = sbr.rel (0) target = $region9
  $region8: #{_dropout_impl.1} parent=0 // pred_region
    _
  $region9: #{_dropout_impl.1} parent=0 // pred_fallthru
    _
  // Predicated region
  $region10: #{_dropout_impl.1} parent=0 // pred_check
    _
  $region11: #{_dropout_impl.1} parent=0 // pred_check_branch
    %57 = sbr.rel (0) target = $region13
  $region12: #{_dropout_impl.1} parent=0 // pred_region
    _
  $region13: #{_dropout_impl.1} parent=0 // pred_fallthru
    _

</llo_original>
